<compile_context>
chip_gen: v7x
topology: tpu7x:2x2x1
jax: 0.10.0
libtpu: 0.0.40
codegen_flags: <defaults>
</compile_context>

<pallas_src>
import math

import jax
import jax.numpy as jnp
import numpy as np
from jax.experimental import pallas as pl
from jax.experimental.pallas import tpu as pltpu


def _round_up(x, m):
    return -(-x // m) * m


# --------------------------------------------------------------------------- #
# Kernel
# --------------------------------------------------------------------------- #
def _critic_mlp_kernel(x_ref, w_ref, o_ref):
    # x_ref: (H, TB)    bf16 -- activations (features on sublanes, batch on
    #                           lanes) with a constant-1 row at index H-1.
    # w_ref: (L, H, H)  bf16 -- augmented weights, PyTorch (out, in) orientation;
    #                           column H-1 holds the layer bias, and row H-1 is
    #                           e_{H-1} so the ones-row survives every layer.
    # o_ref: (OUT8, TB) f32  -- row 0 carries the critic value, rest is padding.
    n_layers = w_ref.shape[0]
    out_rows = o_ref.shape[0]

    h = x_ref[...]
    for i in range(n_layers - 1):            # unrolled at trace time
        acc = jnp.dot(w_ref[i], h, preferred_element_type=jnp.float32)  # MXU, f32 acc
        h = jnp.maximum(acc, 0.0).astype(x_ref.dtype)                   # f32 ReLU -> bf16

    # Final layer: only the first `out_rows` (8) output rows are needed, so the
    # last dependent matmul shrinks to (OUT8, H) x (H, TB).
    w_last = w_ref[n_layers - 1][:out_rows, :]
    acc = jnp.dot(w_last, h, preferred_element_type=jnp.float32)
    o_ref[...] = acc.astype(o_ref.dtype)                                # lane-dense store


# --------------------------------------------------------------------------- #
# One-time parameter packing (hoisted out of the per-call path)
# --------------------------------------------------------------------------- #
def pack_critic_params(params, param_dtype=jnp.bfloat16):
    """params: list of (W(out,in) f32, b(out,) f32) in layer order.

    Returns a single (L, H, H) augmented weight slab (bias folded in) plus
    static metadata used by the per-call wrapper.
    """
    L = len(params)
    in_size = params[0][0].shape[1]
    out_size = params[-1][0].shape[0]
    feat_dims = [in_size] + [w.shape[0] for (w, _) in params]
    # +1 reserves the constant-1 (bias) row; round to a sublane multiple.
    H = _round_up(max(feat_dims) + 1, 8)
    one_row = H - 1

    w_slab = np.zeros((L, H, H), dtype=np.float32)
    for i, (w, b) in enumerate(params):
        o_f, i_f = w.shape
        w_slab[i, :o_f, :i_f] = np.asarray(w, dtype=np.float32)
        w_slab[i, :o_f, one_row] = np.asarray(b, dtype=np.float32)  # folded bias
        w_slab[i, one_row, one_row] = 1.0                           # keep ones-row alive

    meta = dict(L=L, H=H, one_row=one_row, in_size=in_size, out_size=out_size)
    return jnp.asarray(w_slab, dtype=param_dtype), meta


def _choose_tb(B128, tb_max=512):
    """Pick the batch lane-tile: minimize padding waste first, then prefer a
    grid with >=2 steps (engages v7x's second TensorCore) when B_pad >= 256."""
    candidates = [t for t in (128, 256, 512) if t <= max(128, tb_max)]
    pad = {t: _round_up(B128, t) - B128 for t in candidates}
    min_pad = min(pad.values())
    best = [t for t in candidates if pad[t] == min_pad]
    if B128 >= 256:
        multi = [t for t in best if _round_up(B128, t) // t >= 2]
        if multi:
            return max(multi)
    return max(best)


# --------------------------------------------------------------------------- #
# Per-call forward (only pads/transposes x; the slab is a persistent constant)
# --------------------------------------------------------------------------- #
def critic_mlp_forward(x, w_slab, meta, *, tb_max=512):
    """x: (B, input_size) f32.  w_slab/meta: from pack_critic_params."""
    B = x.shape[0]
    L, H, one_row = meta["L"], meta["H"], meta["one_row"]
    in_size, out_size = meta["in_size"], meta["out_size"]
    out8 = _round_up(out_size, 8)

    B128 = _round_up(B, 128)
    TB = _choose_tb(B128, tb_max)
    B_pad = _round_up(B128, TB)
    grid = (B_pad // TB,)

    dt = w_slab.dtype
    # Activations laid out (features, batch): batch on the 128-lane axis.
    xT = jnp.zeros((H, B_pad), dt)
    xT = xT.at[:in_size, :B].set(x.T.astype(dt))
    xT = xT.at[one_row, :].set(1.0)            # constant-1 row feeds folded biases

    out = pl.pallas_call(
        _critic_mlp_kernel,
        out_shape=jax.ShapeDtypeStruct((out8, B_pad), jnp.float32),
        grid=grid,
        in_specs=[
            pl.BlockSpec((H, TB), lambda i: (0, i)),              # activations
            pl.BlockSpec((L, H, H), lambda i: (0, 0, 0),          # resident weights
                         pipeline_mode=pl.Buffered(1)),
        ],
        out_specs=pl.BlockSpec((out8, TB), lambda i: (0, i)),
        compiler_params=pltpu.CompilerParams(
            dimension_semantics=("parallel",)),                   # shards big B on v7x
    )(xT, w_slab)

    return out[:out_size, :B].T                                   # (B, output_size)


# --------------------------------------------------------------------------- #
# Init + reference
# --------------------------------------------------------------------------- #
def init_linear_params(key, in_features, out_features):
    """PyTorch-style nn.Linear init; weight stored (out, in), bias (out,)."""
    kw, kb = jax.random.split(key)
    bound = 1.0 / math.sqrt(in_features)
    w = jax.random.uniform(kw, (out_features, in_features),
                           minval=-bound, maxval=bound, dtype=jnp.float32)
    b = jax.random.uniform(kb, (out_features,),
                           minval=-bound, maxval=bound, dtype=jnp.float32)
    return w, b


def reference_forward(x, params, compute_dtype=jnp.bfloat16):
    """Same math as the kernel: bf16 matmul operands, bias folded through the
    bf16 ones-row (i.e. bf16 bias), f32 accumulation, f32 ReLU."""
    h = x.astype(compute_dtype)
    acc = None
    for i, (w, b) in enumerate(params):
        acc = jnp.dot(h, w.T.astype(compute_dtype),
                      preferred_element_type=jnp.float32)
        acc = acc + b.astype(compute_dtype).astype(jnp.float32)
        if i < len(params) - 1:
            h = jnp.maximum(acc, 0.0).astype(compute_dtype)
    return acc


if __name__ == "__main__":
    # CriticMLP(input_size=16, hidden_size=[32, 32, 32], output_size=1), batch=8
    input_size = 16
    hidden_size = [32, 32, 32]
    output_size = 1
    batch = 8

    key = jax.random.PRNGKey(0)
    k_x, k1, k2, k3, k4 = jax.random.split(key, 5)

    x = jax.random.normal(k_x, (batch, input_size), dtype=jnp.float32)
    params = [
        init_linear_params(k1, input_size, hidden_size[0]),
        init_linear_params(k2, hidden_size[0], hidden_size[1]),
        init_linear_params(k3, hidden_size[1], hidden_size[2]),
        init_linear_params(k4, hidden_size[2], output_size),
    ]

    # One-time packing (outside the per-call path).
    w_slab, meta = pack_critic_params(params)

    # Per-call path (pad/transpose x + fused kernel), jitted; w_slab is a
    # persistent device constant captured by closure.
    fwd = jax.jit(lambda xx: critic_mlp_forward(xx, w_slab, meta))

    out = jax.block_until_ready(fwd(x))
    ref = reference_forward(x, params)

    assert out.shape == (batch, output_size), out.shape
    assert jnp.allclose(out, ref, atol=1e-3, rtol=1e-3), (
        "mismatch vs reference", float(jnp.max(jnp.abs(out - ref))))

    print("KERNEL_OK")
</pallas_src>

<mosaic_0001>
module attributes {stable_mosaic.version = 11 : i64} {
  func.func @_critic_mlp_kernel(%arg0: i32, %arg1: memref<40x128xbf16, #tpu.memory_space<vmem>>, %arg2: memref<4x40x40xbf16, #tpu.memory_space<vmem>>, %arg3: memref<8x128xf32, #tpu.memory_space<vmem>>) attributes {dimension_semantics = [#tpu.dimension_semantics<parallel>], iteration_bounds = array<i64: 1>, scalar_prefetch = 0 : i64, scratch_operands = 0 : i64, tpu.core_type = #tpu.core_type<tc>, window_params = [{transform_indices = @transform_0, window_bounds = array<i64: 40, 128>}, {pipeline_mode = #tpu.pipeline_mode<synchronous>, transform_indices = @transform_1, window_bounds = array<i64: 4, 40, 40>}, {transform_indices = @transform_2, window_bounds = array<i64: 8, 128>}]} {
    %c0 = arith.constant 0 : index
    %c0_0 = arith.constant 0 : index
    %0 = vector.load %arg1[%c0, %c0_0] : memref<40x128xbf16, #tpu.memory_space<vmem>>, vector<40x128xbf16>
    %c0_1 = arith.constant 0 : index
    %c0_2 = arith.constant 0 : index
    %c0_3 = arith.constant 0 : index
    %1 = vector.load %arg2[%c0_1, %c0_2, %c0_3] : memref<4x40x40xbf16, #tpu.memory_space<vmem>>, vector<1x40x40xbf16>
    %2 = vector.shape_cast %1 : vector<1x40x40xbf16> to vector<40x40xbf16>
    %cst = arith.constant dense<0.000000e+00> : vector<40x128xf32>
    %3 = tpu.matmul %2, %0, %cst {dimension_numbers = #tpu.dot_dimension_numbers<[1], [0], [0], [1], [0, 0, 1, 1], [], []>} : vector<40x40xbf16>, vector<40x128xbf16>, vector<40x128xf32> -> vector<40x128xf32>
    %cst_4 = arith.constant 0.000000e+00 : f32
    %4 = vector.broadcast %cst_4 : f32 to vector<40x128xf32>
    %5 = arith.maximumf %3, %4 : vector<40x128xf32>
    %6 = arith.truncf %5 : vector<40x128xf32> to vector<40x128xbf16>
    %c1 = arith.constant 1 : index
    %c0_5 = arith.constant 0 : index
    %c0_6 = arith.constant 0 : index
    %7 = vector.load %arg2[%c1, %c0_5, %c0_6] : memref<4x40x40xbf16, #tpu.memory_space<vmem>>, vector<1x40x40xbf16>
    %8 = vector.shape_cast %7 : vector<1x40x40xbf16> to vector<40x40xbf16>
    %cst_7 = arith.constant dense<0.000000e+00> : vector<40x128xf32>
    %9 = tpu.matmul %8, %6, %cst_7 {dimension_numbers = #tpu.dot_dimension_numbers<[1], [0], [0], [1], [0, 0, 1, 1], [], []>} : vector<40x40xbf16>, vector<40x128xbf16>, vector<40x128xf32> -> vector<40x128xf32>
    %cst_8 = arith.constant 0.000000e+00 : f32
    %10 = vector.broadcast %cst_8 : f32 to vector<40x128xf32>
    %11 = arith.maximumf %9, %10 : vector<40x128xf32>
    %12 = arith.truncf %11 : vector<40x128xf32> to vector<40x128xbf16>
    %c2 = arith.constant 2 : index
    %c0_9 = arith.constant 0 : index
    %c0_10 = arith.constant 0 : index
    %13 = vector.load %arg2[%c2, %c0_9, %c0_10] : memref<4x40x40xbf16, #tpu.memory_space<vmem>>, vector<1x40x40xbf16>
    %14 = vector.shape_cast %13 : vector<1x40x40xbf16> to vector<40x40xbf16>
    %cst_11 = arith.constant dense<0.000000e+00> : vector<40x128xf32>
    %15 = tpu.matmul %14, %12, %cst_11 {dimension_numbers = #tpu.dot_dimension_numbers<[1], [0], [0], [1], [0, 0, 1, 1], [], []>} : vector<40x40xbf16>, vector<40x128xbf16>, vector<40x128xf32> -> vector<40x128xf32>
    %cst_12 = arith.constant 0.000000e+00 : f32
    %16 = vector.broadcast %cst_12 : f32 to vector<40x128xf32>
    %17 = arith.maximumf %15, %16 : vector<40x128xf32>
    %18 = arith.truncf %17 : vector<40x128xf32> to vector<40x128xbf16>
    %c3 = arith.constant 3 : index
    %c0_13 = arith.constant 0 : index
    %c0_14 = arith.constant 0 : index
    %19 = vector.load %arg2[%c3, %c0_13, %c0_14] : memref<4x40x40xbf16, #tpu.memory_space<vmem>>, vector<1x40x40xbf16>
    %20 = vector.shape_cast %19 : vector<1x40x40xbf16> to vector<40x40xbf16>
    %21 = vector.extract_strided_slice %20 {offsets = [0, 0], sizes = [8, 40], strides = [1, 1]} : vector<40x40xbf16> to vector<8x40xbf16>
    %cst_15 = arith.constant dense<0.000000e+00> : vector<8x128xf32>
    %22 = tpu.matmul %21, %18, %cst_15 {dimension_numbers = #tpu.dot_dimension_numbers<[1], [0], [0], [1], [0, 0, 1, 1], [], []>} : vector<8x40xbf16>, vector<40x128xbf16>, vector<8x128xf32> -> vector<8x128xf32>
    %c0_16 = arith.constant 0 : index
    %c0_17 = arith.constant 0 : index
    %23 = vector.load %arg3[%c0_16, %c0_17] : memref<8x128xf32, #tpu.memory_space<vmem>>, vector<8x128xf32>
    tpu.vector_store %arg3[%c0_16, %c0_17], %22 {strides = array<i32>} : memref<8x128xf32, #tpu.memory_space<vmem>>, vector<8x128xf32>,
    return
  }
  func.func @transform_0(%arg0: i32) -> (i32, i32) {
    %c0_i32 = arith.constant 0 : i32
    %c0_i32_0 = arith.constant 0 : i32
    return %c0_i32, %arg0 : i32, i32
  }
  func.func @transform_1(%arg0: i32) -> (i32, i32, i32) {
    %c0_i32 = arith.constant 0 : i32
    %c0_i32_0 = arith.constant 0 : i32
    %c0_i32_1 = arith.constant 0 : i32
    %c0_i32_2 = arith.constant 0 : i32
    return %c0_i32, %c0_i32_0, %c0_i32_1 : i32, i32, i32
  }
  func.func @transform_2(%arg0: i32) -> (i32, i32) {
    %c0_i32 = arith.constant 0 : i32
    %c0_i32_0 = arith.constant 0 : i32
    return %c0_i32, %arg0 : i32, i32
  }
}

</mosaic_0001>

<llo_original>
// kernel: _lambda_.1
$region0: #{_lambda_.1}
  #allocation0 [shape = 'u32[]', space=smem, size = 0x4, offset = 0x4, fixed_abs, tag = 'smem constant byte address 0x4 - core index']
  #allocation1 [shape = 'u32[144,128]{1,0:T(1,128)}', space=vmem, size = 0x12000, scoped, tag = 'internal scratch']
  %s0 = inlined_call_operand.vmem [shape: bf16[40,128], index: 0, kind: input, shape index: {}]
  %s1 = inlined_call_operand.hbm [shape: bf16[4,40,40], index: 1, kind: input, shape index: {}]
  %s2 = inlined_call_operand.vmem [shape: f32[8,128], index: 2, kind: output, shape index: {}]
  %s3 = sld [smem:[#allocation0]]
  $region22: #{_lambda_.1} parent=0
    _
  %s5 = ssub.s32 1, %s3
  %s6 = scalar_select 0, %s5, %s3
  $region1: #{_lambda_.1} parent=0
    #allocation2 [shape = 'u8[40960]{0}', space=vmem, size = 0xa000, scoped, tag = 'input window, operand 1, single buffered']
    #allocation3 [shape = 's32[1]{0}', space=sflag, size = 0x4, scoped, tag = 'scoped memory for _lambda_.1']
    %7 = vsyncpa [#allocation3], 0
    // Predicated region
    $region2: #{_lambda_.1} parent=1 // pred_check
      _
    $region3: #{_lambda_.1} parent=1 // pred_check_branch
      %9 = sbr.rel (0) target = $region5
    $region4: #{_lambda_.1} parent=1 // pred_region
      _
    $region5: #{_lambda_.1} parent=1 // pred_fallthru
      _
    // Predicated region
    $region6: #{_lambda_.1} parent=1 // pred_check
      _
    $region7: #{_lambda_.1} parent=1 // pred_check_branch
      %11 = sbr.rel (0) target = $region9
    $region8: #{_lambda_.1} parent=1 // pred_region
      %s13 = ssub.s32 1280, 1280
      %14 = vsyncadd [#allocation3], %s13
      %s15 = sshll.u32 [#allocation2], 4
      %s16 = int_to_ptr.vmem [resolvable:$true] %s15
      %21 = dma.hbm_to_vmem [thread:$0]  %s1, 1280, %s16, [#allocation3], 64, 64, 4
    $region9: #{_lambda_.1} parent=1 // pred_fallthru
      _
    // Predicated region
    $region10: #{_lambda_.1} parent=1 // pred_check
      _
    $region11: #{_lambda_.1} parent=1 // pred_check_branch
      %23 = sbr.rel (0) target = $region13
    $region12: #{_lambda_.1} parent=1 // pred_region
      %24 = dma.done [#allocation3], 1280
    $region13: #{_lambda_.1} parent=1 // pred_fallthru
      _
    %v26 = vld [vmem:[%s0] sm:$0xf]
    %v27 = vld [vmem:[%s0 + $0x4] sm:$0xf]
    %v28 = vld [vmem:[%s0 + $0x8] sm:$0xf]
    %v29 = vld [vmem:[%s0 + $0xc] sm:$0xf]
    %v30 = vld [vmem:[%s0 + $0x10] sm:$0xf]
    %v31 = vld [vmem:[#allocation2] sm:$0xf]
    %v32 = vld [vmem:[#allocation2 + $0x4] sm:$0xf]
    %v33 = vld [vmem:[#allocation2 + $0x8] sm:$0xf]
    %v34 = vld [vmem:[#allocation2 + $0xc] sm:$0xf]
    %v35 = vld [vmem:[#allocation2 + $0x10] sm:$0xf]
    %v41 = vunpack.c.l.b16 %v31
    %v42 = vunpack.c.l.b16 %v32
    %v43 = vunpack.c.l.b16 %v33
    %v44 = vunpack.c.l.b16 %v34
    %v45 = vunpack.c.l.b16 %v35
    %v46 = vpack.c.b16 %v42, %v41
    %v47 = vpack.c.b16 %v44, %v43
    %v48 = vpack.c.b16 %v45, %v45
    %v54 = vunpack.c.l.b16 %v26
    %v55 = vunpack.c.l.b16 %v27
    %v56 = vunpack.c.l.b16 %v28
    %v57 = vunpack.c.l.b16 %v29
    %v58 = vunpack.c.l.b16 %v30
    %v59 = vpack.c.b16 %v55, %v54
    %v60 = vpack.c.b16 %v57, %v56
    %v61 = vpack.c.b16 %v58, %v58
    %vm64 = vcmask 326656
    %v66 = vsel %vm64, %v46, 0
    %v69 = vsel %vm64, %v47, 0
    %v72 = vsel %vm64, %v48, 0
    %vm74 = vcmask 1043456
    %v76 = vsel %vm74, %v61, 0
    %78 = vmatprep.subr.bf16.mxu0 0
    %79 = vmatpush1.bf16.msra.mxu0 %v59
    %80 = vmatprep.subr.bf16.mxu0 0
    %81 = vmatpush1.bf16.msra.mxu0 %v60
    %82 = vmatprep.subr.bf16.mxu0 0
    %83 = vmatpush1.bf16.msra.mxu0 %v76
    %84 = vmatprep.subr.bf16.mxu0 0
    %85 = vmatpush1.bf16.msra.mxu0 0
    %86 = vmatprep.subr.bf16.mxu0 0
    %87 = vmatpush1.bf16.msra.mxu0 0
    %88 = vmatprep.subr.bf16.mxu0 0
    %89 = vmatpush1.bf16.msra.mxu0 0
    %90 = vmatprep.subr.bf16.mxu0 0
    %91 = vmatpush1.bf16.msra.mxu0 0
    %92 = vmatprep.subr.bf16.mxu0 0
    %93 = vmatpush1.bf16.msra.mxu0 0
    %94 = vmatprep.subr.bf16.mxu0 0
    %95 = vmatpush1.bf16.msra.mxu0 0
    %96 = vmatprep.subr.bf16.mxu0 0
    %97 = vmatpush1.bf16.msra.mxu0 0
    %98 = vmatprep.subr.bf16.mxu0 0
    %99 = vmatpush1.bf16.msra.mxu0 0
    %100 = vmatprep.subr.bf16.mxu0 0
    %101 = vmatpush1.bf16.msra.mxu0 0
    %102 = vmatprep.subr.bf16.mxu0 0
    %103 = vmatpush1.bf16.msra.mxu0 0
    %104 = vmatprep.subr.bf16.mxu0 0
    %105 = vmatpush1.bf16.msra.mxu0 0
    %106 = vmatprep.subr.bf16.mxu0 0
    %107 = vmatpush1.bf16.msra.mxu0 0
    %108 = vmatprep.subr.bf16.mxu0 0
    %109 = vmatpush1.bf16.msra.mxu0 0
    %110 = vmatprep.mubr.bf16.mxu0 0
    %111 = vmatmul.mubr.bf16.gmra.mrb[0].mxu0 %v66
    %v112 = vpop.f32.mrb[0].mxu0
    %v113 = vadd.f32 0.0, %v112
    %v114 = vpop.f32.mrb[0].mxu0
    %v115 = vpop.f32.mrb[0].mxu0
    %v116 = vadd.f32 0.0, %v115
    %v117 = vpop.f32.mrb[0].mxu0
    %118 = vmatprep.mubr.bf16.mxu0 0
    %119 = vmatmul.mubr.bf16.gmra.mrb[0].mxu0 %v69
    %v120 = vpop.f32.mrb[0].mxu0
    %v121 = vadd.f32 0.0, %v120
    %v122 = vpop.f32.mrb[0].mxu0
    %v123 = vpop.f32.mrb[0].mxu0
    %v124 = vadd.f32 0.0, %v123
    %v125 = vpop.f32.mrb[0].mxu0
    %126 = vmatprep.mubr.bf16.mxu0 0
    %127 = vmatmul.mubr.bf16.gmra.mrb[0].mxu0 %v72
    %v128 = vpop.f32.mrb[0].mxu0
    %v129 = vadd.f32 0.0, %v128
    %v130 = vpop.f32.mrb[0].mxu0
    %v131 = vpop.f32.mrb[0].mxu0
    %v132 = vpop.f32.mrb[0].mxu0
    %133 = vdwg.mxu0
    %v134 = vmax.f32 %v113, 0.0
    %v135 = vmax.f32 %v116, 0.0
    %v136 = vmax.f32 %v121, 0.0
    %v137 = vmax.f32 %v124, 0.0
    %v138 = vmax.f32 %v129, 0.0
    %v139 = vpack.c.bf16 %v135, %v134
    %v140 = vpack.c.bf16 %v137, %v136
    %v141 = vpack.c.bf16 %v138, %v138
    %s142 = scalar_lea.vmem [#allocation2], 20
    %v143 = vld [vmem:[%s142] sm:$0xf]
    %v144 = vld [vmem:[%s142 + $0x4] sm:$0xf]
    %v145 = vld [vmem:[%s142 + $0x8] sm:$0xf]
    %v146 = vld [vmem:[%s142 + $0xc] sm:$0xf]
    %v147 = vld [vmem:[%s142 + $0x10] sm:$0xf]
    %v153 = vunpack.c.l.b16 %v143
    %v154 = vunpack.c.l.b16 %v144
    %v155 = vunpack.c.l.b16 %v145
    %v156 = vunpack.c.l.b16 %v146
    %v157 = vunpack.c.l.b16 %v147
    %v158 = vpack.c.b16 %v154, %v153
    %v159 = vpack.c.b16 %v156, %v155
    %v160 = vpack.c.b16 %v157, %v157
    %v162 = vsel %vm64, %v158, 0
    %v165 = vsel %vm64, %v159, 0
    %v168 = vsel %vm64, %v160, 0
    %v171 = vsel %vm74, %v141, 0
    %173 = vmatprep.subr.bf16.mxu0 0
    %174 = vmatpush1.bf16.msra.mxu0 %v139
    %175 = vmatprep.subr.bf16.mxu0 0
    %176 = vmatpush1.bf16.msra.mxu0 %v140
    %177 = vmatprep.subr.bf16.mxu0 0
    %178 = vmatpush1.bf16.msra.mxu0 %v171
    %179 = vmatprep.subr.bf16.mxu0 0
    %180 = vmatpush1.bf16.msra.mxu0 0
    %181 = vmatprep.subr.bf16.mxu0 0
    %182 = vmatpush1.bf16.msra.mxu0 0
    %183 = vmatprep.subr.bf16.mxu0 0
    %184 = vmatpush1.bf16.msra.mxu0 0
    %185 = vmatprep.subr.bf16.mxu0 0
    %186 = vmatpush1.bf16.msra.mxu0 0
    %187 = vmatprep.subr.bf16.mxu0 0
    %188 = vmatpush1.bf16.msra.mxu0 0
    %189 = vmatprep.subr.bf16.mxu0 0
    %190 = vmatpush1.bf16.msra.mxu0 0
    %191 = vmatprep.subr.bf16.mxu0 0
    %192 = vmatpush1.bf16.msra.mxu0 0
    %193 = vmatprep.subr.bf16.mxu0 0
    %194 = vmatpush1.bf16.msra.mxu0 0
    %195 = vmatprep.subr.bf16.mxu0 0
    %196 = vmatpush1.bf16.msra.mxu0 0
    %197 = vmatprep.subr.bf16.mxu0 0
    %198 = vmatpush1.bf16.msra.mxu0 0
    %199 = vmatprep.subr.bf16.mxu0 0
    %200 = vmatpush1.bf16.msra.mxu0 0
    %201 = vmatprep.subr.bf16.mxu0 0
    %202 = vmatpush1.bf16.msra.mxu0 0
    %203 = vmatprep.subr.bf16.mxu0 0
    %204 = vmatpush1.bf16.msra.mxu0 0
    %205 = vmatprep.mubr.bf16.mxu0 0
    %206 = vmatmul.mubr.bf16.gmra.mrb[0].mxu0 %v162
    %v207 = vpop.f32.mrb[0].mxu0
    %v208 = vadd.f32 0.0, %v207
    %v209 = vpop.f32.mrb[0].mxu0
    %v210 = vpop.f32.mrb[0].mxu0
    %v211 = vadd.f32 0.0, %v210
    %v212 = vpop.f32.mrb[0].mxu0
    %213 = vmatprep.mubr.bf16.mxu0 0
    %214 = vmatmul.mubr.bf16.gmra.mrb[0].mxu0 %v165
    %v215 = vpop.f32.mrb[0].mxu0
    %v216 = vadd.f32 0.0, %v215
    %v217 = vpop.f32.mrb[0].mxu0
    %v218 = vpop.f32.mrb[0].mxu0
    %v219 = vadd.f32 0.0, %v218
    %v220 = vpop.f32.mrb[0].mxu0
    %221 = vmatprep.mubr.bf16.mxu0 0
    %222 = vmatmul.mubr.bf16.gmra.mrb[0].mxu0 %v168
    %v223 = vpop.f32.mrb[0].mxu0
    %v224 = vadd.f32 0.0, %v223
    %v225 = vpop.f32.mrb[0].mxu0
    %v226 = vpop.f32.mrb[0].mxu0
    %v227 = vpop.f32.mrb[0].mxu0
    %228 = vdwg.mxu0
    %v229 = vmax.f32 %v208, 0.0
    %v230 = vmax.f32 %v211, 0.0
    %v231 = vmax.f32 %v216, 0.0
    %v232 = vmax.f32 %v219, 0.0
    %v233 = vmax.f32 %v224, 0.0
    %v234 = vpack.c.bf16 %v230, %v229
    %v235 = vpack.c.bf16 %v232, %v231
    %v236 = vpack.c.bf16 %v233, %v233
    %s237 = scalar_lea.vmem [#allocation2], 40
    %v238 = vld [vmem:[%s237] sm:$0xf]
    %v239 = vld [vmem:[%s237 + $0x4] sm:$0xf]
    %v240 = vld [vmem:[%s237 + $0x8] sm:$0xf]
    %v241 = vld [vmem:[%s237 + $0xc] sm:$0xf]
    %v242 = vld [vmem:[%s237 + $0x10] sm:$0xf]
    %v248 = vunpack.c.l.b16 %v238
    %v249 = vunpack.c.l.b16 %v239
    %v250 = vunpack.c.l.b16 %v240
    %v251 = vunpack.c.l.b16 %v241
    %v252 = vunpack.c.l.b16 %v242
    %v253 = vpack.c.b16 %v249, %v248
    %v254 = vpack.c.b16 %v251, %v250
    %v255 = vpack.c.b16 %v252, %v252
    %v257 = vsel %vm64, %v253, 0
    %v260 = vsel %vm64, %v254, 0
    %v263 = vsel %vm64, %v255, 0
    %v266 = vsel %vm74, %v236, 0
    %268 = vmatprep.subr.bf16.mxu0 0
    %269 = vmatpush1.bf16.msra.mxu0 %v234
    %270 = vmatprep.subr.bf16.mxu0 0
    %271 = vmatpush1.bf16.msra.mxu0 %v235
    %272 = vmatprep.subr.bf16.mxu0 0
    %273 = vmatpush1.bf16.msra.mxu0 %v266
    %274 = vmatprep.subr.bf16.mxu0 0
    %275 = vmatpush1.bf16.msra.mxu0 0
    %276 = vmatprep.subr.bf16.mxu0 0
    %277 = vmatpush1.bf16.msra.mxu0 0
    %278 = vmatprep.subr.bf16.mxu0 0
    %279 = vmatpush1.bf16.msra.mxu0 0
    %280 = vmatprep.subr.bf16.mxu0 0
    %281 = vmatpush1.bf16.msra.mxu0 0
    %282 = vmatprep.subr.bf16.mxu0 0
    %283 = vmatpush1.bf16.msra.mxu0 0
    %284 = vmatprep.subr.bf16.mxu0 0
    %285 = vmatpush1.bf16.msra.mxu0 0
    %286 = vmatprep.subr.bf16.mxu0 0
    %287 = vmatpush1.bf16.msra.mxu0 0
    %288 = vmatprep.subr.bf16.mxu0 0
    %289 = vmatpush1.bf16.msra.mxu0 0
    %290 = vmatprep.subr.bf16.mxu0 0
    %291 = vmatpush1.bf16.msra.mxu0 0
    %292 = vmatprep.subr.bf16.mxu0 0
    %293 = vmatpush1.bf16.msra.mxu0 0
    %294 = vmatprep.subr.bf16.mxu0 0
    %295 = vmatpush1.bf16.msra.mxu0 0
    %296 = vmatprep.subr.bf16.mxu0 0
    %297 = vmatpush1.bf16.msra.mxu0 0
    %298 = vmatprep.subr.bf16.mxu0 0
    %299 = vmatpush1.bf16.msra.mxu0 0
    %300 = vmatprep.mubr.bf16.mxu0 0
    %301 = vmatmul.mubr.bf16.gmra.mrb[0].mxu0 %v257
    %v302 = vpop.f32.mrb[0].mxu0
    %v303 = vadd.f32 0.0, %v302
    %v304 = vpop.f32.mrb[0].mxu0
    %v305 = vpop.f32.mrb[0].mxu0
    %v306 = vadd.f32 0.0, %v305
    %v307 = vpop.f32.mrb[0].mxu0
    %308 = vmatprep.mubr.bf16.mxu0 0
    %309 = vmatmul.mubr.bf16.gmra.mrb[0].mxu0 %v260
    %v310 = vpop.f32.mrb[0].mxu0
    %v311 = vadd.f32 0.0, %v310
    %v312 = vpop.f32.mrb[0].mxu0
    %v313 = vpop.f32.mrb[0].mxu0
    %v314 = vadd.f32 0.0, %v313
    %v315 = vpop.f32.mrb[0].mxu0
    %316 = vmatprep.mubr.bf16.mxu0 0
    %317 = vmatmul.mubr.bf16.gmra.mrb[0].mxu0 %v263
    %v318 = vpop.f32.mrb[0].mxu0
    %v319 = vadd.f32 0.0, %v318
    %v320 = vpop.f32.mrb[0].mxu0
    %v321 = vpop.f32.mrb[0].mxu0
    %v322 = vpop.f32.mrb[0].mxu0
    %323 = vdwg.mxu0
    %v324 = vmax.f32 %v303, 0.0
    %v325 = vmax.f32 %v306, 0.0
    %v326 = vmax.f32 %v311, 0.0
    %v327 = vmax.f32 %v314, 0.0
    %v328 = vmax.f32 %v319, 0.0
    %v329 = vpack.c.bf16 %v325, %v324
    %v330 = vpack.c.bf16 %v327, %v326
    %v331 = vpack.c.bf16 %v328, %v328
    %s332 = scalar_lea.vmem [#allocation2], 60
    %v333 = vld [vmem:[%s332] sm:$0xf]
    %v335 = vsel %vm64, %v333, 0
    %v338 = vsel %vm74, %v331, 0
    %340 = vmatprep.subr.bf16.mxu0 0
    %341 = vmatpush1.bf16.msra.mxu0 %v329
    %342 = vmatprep.subr.bf16.mxu0 0
    %343 = vmatpush1.bf16.msra.mxu0 %v330
    %344 = vmatprep.subr.bf16.mxu0 0
    %345 = vmatpush1.bf16.msra.mxu0 %v338
    %346 = vmatprep.subr.bf16.mxu0 0
    %347 = vmatpush1.bf16.msra.mxu0 0
    %348 = vmatprep.subr.bf16.mxu0 0
    %349 = vmatpush1.bf16.msra.mxu0 0
    %350 = vmatprep.subr.bf16.mxu0 0
    %351 = vmatpush1.bf16.msra.mxu0 0
    %352 = vmatprep.subr.bf16.mxu0 0
    %353 = vmatpush1.bf16.msra.mxu0 0
    %354 = vmatprep.subr.bf16.mxu0 0
    %355 = vmatpush1.bf16.msra.mxu0 0
    %356 = vmatprep.subr.bf16.mxu0 0
    %357 = vmatpush1.bf16.msra.mxu0 0
    %358 = vmatprep.subr.bf16.mxu0 0
    %359 = vmatpush1.bf16.msra.mxu0 0
    %360 = vmatprep.subr.bf16.mxu0 0
    %361 = vmatpush1.bf16.msra.mxu0 0
    %362 = vmatprep.subr.bf16.mxu0 0
    %363 = vmatpush1.bf16.msra.mxu0 0
    %364 = vmatprep.subr.bf16.mxu0 0
    %365 = vmatpush1.bf16.msra.mxu0 0
    %366 = vmatprep.subr.bf16.mxu0 0
    %367 = vmatpush1.bf16.msra.mxu0 0
    %368 = vmatprep.subr.bf16.mxu0 0
    %369 = vmatpush1.bf16.msra.mxu0 0
    %370 = vmatprep.subr.bf16.mxu0 0
    %371 = vmatpush1.bf16.msra.mxu0 0
    %372 = vmatprep.mubr.bf16.mxu0 0
    %373 = vmatmul.mubr.bf16.gmra.mrb[0].mxu0 %v335
    %v374 = vpop.f32.mrb[0].mxu0
    %v375 = vadd.f32 0.0, %v374
    %v376 = vpop.f32.mrb[0].mxu0
    %v377 = vpop.f32.mrb[0].mxu0
    %v378 = vpop.f32.mrb[0].mxu0
    %379 = vdwg.mxu0
    %380 = vst [vmem:[%s2] sm:$0xff] %v375
    // Predicated region
    $region14: #{_lambda_.1} parent=1 // pred_check
      _
    $region15: #{_lambda_.1} parent=1 // pred_check_branch
      %382 = sbr.rel (0) target = $region17
    $region16: #{_lambda_.1} parent=1 // pred_region
      _
    $region17: #{_lambda_.1} parent=1 // pred_fallthru
      _
    // Predicated region
    $region18: #{_lambda_.1} parent=1 // pred_check
      _
    $region19: #{_lambda_.1} parent=1 // pred_check_branch
      %384 = sbr.rel (0) target = $region21
    $region20: #{_lambda_.1} parent=1 // pred_region
      _
    $region21: #{_lambda_.1} parent=1 // pred_fallthru
      _
    %385 = vsyncpa [#allocation3], 1

</llo_original>
